<compile_context>
chip_gen: v5e
topology: v5e:2x2
jax: 0.10.0
libtpu: 0.0.40
codegen_flags: <defaults>
</compile_context>

<pallas_src>
import numpy as np
import jax
import jax.numpy as jnp
from jax.experimental import pallas as pl
from jax.experimental.pallas import tpu as pltpu

LANE = 128
SUBLANE = 8


def _round_up(x, m):
    return (x + m - 1) // m * m


def upsample1d_kernel(x_ref, halo_ref, we_ref, wo_ref, b_ref, o_ref):
    # x_ref: (1, tile_L, Cp)      halo_ref: (1, 1, 2, Cp)
    # we_ref/wo_ref: (2*Cp, Cp)   b_ref: (1, Cp)   o_ref: (1, 2, tile_L, Cp)
    x = x_ref[0]                                   # (tile_L, Cp)
    tl = x.shape[0]

    halo = halo_ref[0, 0]                          # (2, Cp)
    prev_row = halo[0:1, :]                        # x[tile_start - 1] (or 0)
    next_row = halo[1:2, :]                        # x[tile_end]       (or 0)

    row = jax.lax.broadcasted_iota(jnp.int32, x.shape, 0)
    # In-tile shifted copies; boundary rows come from the halo input.
    # (pltpu.roll requires non-negative shift: shift by tl-1 == shift by -1.)
    x_prev = jnp.where(row == 0, prev_row, pltpu.roll(x, shift=1, axis=0))
    x_next = jnp.where(row == tl - 1, next_row, pltpu.roll(x, shift=tl - 1, axis=0))

    xe = jnp.concatenate([x, x_prev], axis=1)      # (tile_L, 2*Cp)
    xo = jnp.concatenate([x, x_next], axis=1)      # (tile_L, 2*Cp)

    b = b_ref[...].astype(jnp.float32)             # (1, Cp), f32 bias add
    out_even = jnp.dot(xe, we_ref[...], preferred_element_type=jnp.float32) + b
    out_odd = jnp.dot(xo, wo_ref[...], preferred_element_type=jnp.float32) + b

    # Two dense (tile_L, Cp) stores — lane/sublane dense output path.
    o_ref[0, 0, :, :] = out_even.astype(o_ref.dtype)
    o_ref[0, 1, :, :] = out_odd.astype(o_ref.dtype)


def upsample1d(x_ncl, weight, bias, *, compute_dtype=jnp.bfloat16,
               out_dtype=None, tile_l=None):
    """ConvTranspose1d(C, C, k=4, stride=2, pad=1).

    x_ncl:  (N, C, L)               (PyTorch NCL layout)
    weight: (C_in, C_out, 4)        (PyTorch ConvTranspose1d layout)
    bias:   (C,)
    returns (N, C, 2L)
    """
    N, C, L = x_ncl.shape
    out_dtype = x_ncl.dtype if out_dtype is None else out_dtype

    # Lane-pad channels when C < 128 so lanes / MXU are not mostly idle.
    Cp = _round_up(C, LANE) if C < LANE else C

    bpe_x = jnp.dtype(compute_dtype).itemsize
    bpe_o = jnp.dtype(out_dtype).itemsize

    # Pick tile_L: bounded VMEM (double-buffered x + output blocks <= ~16 MiB),
    # capped at 1024 rows, multiple of 8 sublanes.
    if tile_l is None:
        budget = 16 * 1024 * 1024
        per_row = 2 * Cp * (bpe_x + 2 * bpe_o)     # 2x = double buffering
        tile_l = max(SUBLANE, min(1024, budget // max(per_row, 1)))
    tile_l = _round_up(min(tile_l, _round_up(L, SUBLANE)), SUBLANE)
    Lp = _round_up(L, tile_l)
    nt = Lp // tile_l

    # --- input prep (channels-last, padded, compute dtype) -------------------
    x_nlc = jnp.transpose(x_ncl, (0, 2, 1))                       # (N, L, C)
    x_nlc = jnp.pad(x_nlc, ((0, 0), (0, Lp - L), (0, Cp - C)))
    x_nlc = x_nlc.astype(compute_dtype)                           # (N, Lp, Cp)

    # Fused tap weights: W_even = [W1; W3], W_odd = [W2; W0]  (2Cp, Cp).
    w = jnp.asarray(weight, dtype=jnp.float32)                    # (C, C, 4)
    w = jnp.pad(w, ((0, Cp - C), (0, Cp - C), (0, 0)))
    w = jnp.transpose(w, (2, 0, 1))                               # (4, Cp, Cp)
    w_even = jnp.concatenate([w[1], w[3]], axis=0).astype(compute_dtype)
    w_odd = jnp.concatenate([w[2], w[0]], axis=0).astype(compute_dtype)
    b = jnp.pad(jnp.asarray(bias, dtype=jnp.float32), (0, Cp - C)).reshape(1, Cp)

    # Halo rows per L-tile: x[tile_start - 1] and x[tile_end] (zeros at edges).
    prev_idx = np.arange(nt) * tile_l - 1
    next_idx = (np.arange(nt) + 1) * tile_l
    prev_rows = x_nlc[:, np.maximum(prev_idx, 0), :]              # (N, nt, Cp)
    prev_rows = prev_rows.at[:, 0, :].set(0)
    next_rows = x_nlc[:, np.minimum(next_idx, Lp - 1), :]         # (N, nt, Cp)
    next_rows = next_rows.at[:, nt - 1, :].set(0)
    halo = jnp.stack([prev_rows, next_rows], axis=2)              # (N, nt, 2, Cp)

    # --- VMEM budget ----------------------------------------------------------
    block_bytes = (2 * tile_l * Cp * bpe_x                        # x (2 bufs)
                   + 2 * 2 * tile_l * Cp * bpe_o                  # out (2 bufs)
                   + 2 * 2 * 2 * Cp * Cp * bpe_x                  # w_even + w_odd
                   + 2 * 2 * 2 * Cp * bpe_x + 2 * Cp * 4)         # halo + bias
    vmem_limit = int(min(max(2 * block_bytes, 32 * 1024 * 1024), 64 * 1024 * 1024))

    out = pl.pallas_call(
        upsample1d_kernel,
        out_shape=jax.ShapeDtypeStruct((N, 2, Lp, Cp), out_dtype),
        grid=(N, nt),
        in_specs=[
            pl.BlockSpec((1, tile_l, Cp), lambda n, i: (n, i, 0)),
            pl.BlockSpec((1, 1, 2, Cp), lambda n, i: (n, i, 0, 0)),
            pl.BlockSpec((2 * Cp, Cp), lambda n, i: (0, 0)),
            pl.BlockSpec((2 * Cp, Cp), lambda n, i: (0, 0)),
            pl.BlockSpec((1, Cp), lambda n, i: (0, 0)),
        ],
        out_specs=pl.BlockSpec((1, 2, tile_l, Cp), lambda n, i: (n, 0, i, 0)),
        compiler_params=pltpu.CompilerParams(
            dimension_semantics=("parallel", "parallel"),
            vmem_limit_bytes=vmem_limit,
        ),
    )(x_nlc, halo, w_even, w_odd, b)

    # (N, 2, Lp, Cp) -> (N, C, L, 2) -> (N, C, 2L)  (single transpose; the
    # trailing reshape just merges two contiguous dims).
    out = out[:, :, :L, :C]
    out = jnp.transpose(out, (0, 3, 2, 1))
    return out.reshape(N, C, 2 * L)


def ref_conv_transpose1d(x, weight, bias, stride=2, padding=1, ksize=4):
    """Direct (slow) numpy reference matching torch.nn.ConvTranspose1d."""
    x = np.asarray(x, dtype=np.float32)
    w = np.asarray(weight, dtype=np.float32)
    b = np.asarray(bias, dtype=np.float32)
    N, Cin, L = x.shape
    Lout = (L - 1) * stride - 2 * padding + ksize
    out = np.tile(b[None, :, None], (N, 1, Lout)).astype(np.float32)
    for n in range(N):
        for ci in range(Cin):
            for i in range(L):
                for k in range(ksize):
                    t = i * stride - padding + k
                    if 0 <= t < Lout:
                        out[n, :, t] += x[n, ci, i] * w[ci, :, k]
    return out


if __name__ == "__main__":
    key = jax.random.PRNGKey(0)
    N, C, L = 2, 4, 16

    kx, kw, kb = jax.random.split(key, 3)
    x = jax.random.normal(kx, (N, C, L), dtype=jnp.float32)
    # PyTorch ConvTranspose1d weight shape: (in_channels, out_channels, k).
    fan = C * 4
    bound = 1.0 / np.sqrt(fan)
    weight = jax.random.uniform(kw, (C, C, 4), dtype=jnp.float32,
                                minval=-bound, maxval=bound)
    bias = jax.random.uniform(kb, (C,), dtype=jnp.float32,
                              minval=-bound, maxval=bound)

    ref = ref_conv_transpose1d(x, weight, bias)

    # f32 compute path, single L-tile: tight check against the reference.
    out_f32 = jax.block_until_ready(
        upsample1d(x, weight, bias, compute_dtype=jnp.float32))
    assert out_f32.shape == (N, C, 2 * L), out_f32.shape
    np.testing.assert_allclose(np.asarray(out_f32), ref, rtol=1e-5, atol=1e-5)

    # f32 compute path with forced small L-tiles: exercises the halo handling.
    out_tiled = jax.block_until_ready(
        upsample1d(x, weight, bias, compute_dtype=jnp.float32, tile_l=8))
    np.testing.assert_allclose(np.asarray(out_tiled), ref, rtol=1e-5, atol=1e-5)

    # Default bf16 compute path: looser tolerance.
    out_bf16 = jax.block_until_ready(upsample1d(x, weight, bias))
    np.testing.assert_allclose(np.asarray(out_bf16), ref, rtol=5e-2, atol=5e-2)

    print("KERNEL_OK")
</pallas_src>

<mosaic_0001>
module attributes {stable_mosaic.version = 11 : i64} {
  func.func @upsample1d_kernel(%arg0: i32, %arg1: i32, %arg2: memref<1x16x128xf32, #tpu.memory_space<vmem>>, %arg3: memref<1x1x2x128xf32, #tpu.memory_space<vmem>>, %arg4: memref<256x128xf32, #tpu.memory_space<vmem>>, %arg5: memref<256x128xf32, #tpu.memory_space<vmem>>, %arg6: memref<1x128xf32, #tpu.memory_space<vmem>>, %arg7: memref<1x2x16x128xf32, #tpu.memory_space<vmem>>) attributes {dimension_semantics = [#tpu.dimension_semantics<parallel>, #tpu.dimension_semantics<parallel>], iteration_bounds = array<i64: 2, 1>, scalar_prefetch = 0 : i64, scratch_operands = 0 : i64, tpu.core_type = #tpu.core_type<tc>, window_params = [{transform_indices = @transform_0, window_bounds = array<i64: 1, 16, 128>}, {transform_indices = @transform_1, window_bounds = array<i64: 1, 1, 2, 128>}, {pipeline_mode = #tpu.pipeline_mode<synchronous>, transform_indices = @transform_2, window_bounds = array<i64: 256, 128>}, {pipeline_mode = #tpu.pipeline_mode<synchronous>, transform_indices = @transform_3, window_bounds = array<i64: 256, 128>}, {pipeline_mode = #tpu.pipeline_mode<synchronous>, transform_indices = @transform_4, window_bounds = array<i64: 1, 128>}, {transform_indices = @transform_5, window_bounds = array<i64: 1, 2, 16, 128>}]} {
    %c0 = arith.constant 0 : index
    %c0_0 = arith.constant 0 : index
    %c0_1 = arith.constant 0 : index
    %0 = vector.load %arg2[%c0, %c0_0, %c0_1] : memref<1x16x128xf32, #tpu.memory_space<vmem>>, vector<1x16x128xf32>
    %1 = vector.shape_cast %0 : vector<1x16x128xf32> to vector<16x128xf32>
    %c0_2 = arith.constant 0 : index
    %c0_3 = arith.constant 0 : index
    %c0_4 = arith.constant 0 : index
    %c0_5 = arith.constant 0 : index
    %2 = vector.load %arg3[%c0_2, %c0_3, %c0_4, %c0_5] : memref<1x1x2x128xf32, #tpu.memory_space<vmem>>, vector<1x1x2x128xf32>
    %3 = vector.shape_cast %2 : vector<1x1x2x128xf32> to vector<2x128xf32>
    %4 = vector.extract_strided_slice %3 {offsets = [0, 0], sizes = [1, 128], strides = [1, 1]} : vector<2x128xf32> to vector<1x128xf32>
    %5 = vector.extract_strided_slice %3 {offsets = [1, 0], sizes = [1, 128], strides = [1, 1]} : vector<2x128xf32> to vector<1x128xf32>
    %6 = tpu.iota {dimensions = array<i32: 0>} : vector<16x128xi32>
    %c0_i32 = arith.constant 0 : i32
    %7 = vector.broadcast %c0_i32 : i32 to vector<16x128xi32>
    %8 = arith.cmpi eq, %6, %7 : vector<16x128xi32>
    %c1_i32 = arith.constant 1 : i32
    %9 = tpu.dynamic_rotate %1 by %c1_i32 dim 0 : vector<16x128xf32>, i32 -> vector<16x128xf32>
    %10 = vector.shape_cast %4 : vector<1x128xf32> to vector<1x128xf32>
    %11 = vector.broadcast %10 : vector<1x128xf32> to vector<16x128xf32>
    %12 = arith.select %8, %11, %9 : vector<16x128xi1>, vector<16x128xf32>
    %c15_i32 = arith.constant 15 : i32
    %13 = vector.broadcast %c15_i32 : i32 to vector<16x128xi32>
    %14 = arith.cmpi eq, %6, %13 : vector<16x128xi32>
    %c15_i32_6 = arith.constant 15 : i32
    %15 = tpu.dynamic_rotate %1 by %c15_i32_6 dim 0 : vector<16x128xf32>, i32 -> vector<16x128xf32>
    %16 = vector.shape_cast %5 : vector<1x128xf32> to vector<1x128xf32>
    %17 = vector.broadcast %16 : vector<1x128xf32> to vector<16x128xf32>
    %18 = arith.select %14, %17, %15 : vector<16x128xi1>, vector<16x128xf32>
    %19 = tpu.concatenate %1, %12 in 1 : vector<16x128xf32>, vector<16x128xf32> -> vector<16x256xf32>
    %20 = tpu.concatenate %1, %18 in 1 : vector<16x128xf32>, vector<16x128xf32> -> vector<16x256xf32>
    %c0_7 = arith.constant 0 : index
    %c0_8 = arith.constant 0 : index
    %21 = vector.load %arg6[%c0_7, %c0_8] : memref<1x128xf32, #tpu.memory_space<vmem>>, vector<1x128xf32>
    %c0_9 = arith.constant 0 : index
    %c0_10 = arith.constant 0 : index
    %22 = vector.load %arg4[%c0_9, %c0_10] : memref<256x128xf32, #tpu.memory_space<vmem>>, vector<256x128xf32>
    %cst = arith.constant dense<0.000000e+00> : vector<16x128xf32>
    %23 = tpu.matmul %19, %22, %cst {dimension_numbers = #tpu.dot_dimension_numbers<[1], [0], [0], [1], [0, 0, 1, 1], [], []>} : vector<16x256xf32>, vector<256x128xf32>, vector<16x128xf32> -> vector<16x128xf32>
    %24 = vector.broadcast %21 : vector<1x128xf32> to vector<16x128xf32>
    %25 = arith.addf %23, %24 : vector<16x128xf32>
    %c0_11 = arith.constant 0 : index
    %c0_12 = arith.constant 0 : index
    %26 = vector.load %arg5[%c0_11, %c0_12] : memref<256x128xf32, #tpu.memory_space<vmem>>, vector<256x128xf32>
    %cst_13 = arith.constant dense<0.000000e+00> : vector<16x128xf32>
    %27 = tpu.matmul %20, %26, %cst_13 {dimension_numbers = #tpu.dot_dimension_numbers<[1], [0], [0], [1], [0, 0, 1, 1], [], []>} : vector<16x256xf32>, vector<256x128xf32>, vector<16x128xf32> -> vector<16x128xf32>
    %28 = vector.broadcast %21 : vector<1x128xf32> to vector<16x128xf32>
    %29 = arith.addf %27, %28 : vector<16x128xf32>
    %c0_14 = arith.constant 0 : index
    %c0_15 = arith.constant 0 : index
    %c0_16 = arith.constant 0 : index
    %c0_17 = arith.constant 0 : index
    %30 = vector.load %arg7[%c0_14, %c0_15, %c0_16, %c0_17] : memref<1x2x16x128xf32, #tpu.memory_space<vmem>>, vector<1x1x16x128xf32>
    %31 = vector.shape_cast %30 : vector<1x1x16x128xf32> to vector<16x128xf32>
    %32 = vector.shape_cast %25 : vector<16x128xf32> to vector<1x1x16x128xf32>
    tpu.vector_store %arg7[%c0_14, %c0_15, %c0_16, %c0_17], %32 {strides = array<i32>} : memref<1x2x16x128xf32, #tpu.memory_space<vmem>>, vector<1x1x16x128xf32>,
    %c0_18 = arith.constant 0 : index
    %c1 = arith.constant 1 : index
    %c0_19 = arith.constant 0 : index
    %c0_20 = arith.constant 0 : index
    %33 = vector.load %arg7[%c0_18, %c1, %c0_19, %c0_20] : memref<1x2x16x128xf32, #tpu.memory_space<vmem>>, vector<1x1x16x128xf32>
    %34 = vector.shape_cast %33 : vector<1x1x16x128xf32> to vector<16x128xf32>
    %35 = vector.shape_cast %29 : vector<16x128xf32> to vector<1x1x16x128xf32>
    tpu.vector_store %arg7[%c0_18, %c1, %c0_19, %c0_20], %35 {strides = array<i32>} : memref<1x2x16x128xf32, #tpu.memory_space<vmem>>, vector<1x1x16x128xf32>,
    return
  }
  func.func @transform_0(%arg0: i32, %arg1: i32) -> (i32, i32, i32) {
    %c0_i32 = arith.constant 0 : i32
    %c0_i32_0 = arith.constant 0 : i32
    return %arg0, %arg1, %c0_i32 : i32, i32, i32
  }
  func.func @transform_1(%arg0: i32, %arg1: i32) -> (i32, i32, i32, i32) {
    %c0_i32 = arith.constant 0 : i32
    %c0_i32_0 = arith.constant 0 : i32
    %c0_i32_1 = arith.constant 0 : i32
    return %arg0, %arg1, %c0_i32, %c0_i32_0 : i32, i32, i32, i32
  }
  func.func @transform_2(%arg0: i32, %arg1: i32) -> (i32, i32) {
    %c0_i32 = arith.constant 0 : i32
    %c0_i32_0 = arith.constant 0 : i32
    %c0_i32_1 = arith.constant 0 : i32
    return %c0_i32, %c0_i32_0 : i32, i32
  }
  func.func @transform_3(%arg0: i32, %arg1: i32) -> (i32, i32) {
    %c0_i32 = arith.constant 0 : i32
    %c0_i32_0 = arith.constant 0 : i32
    %c0_i32_1 = arith.constant 0 : i32
    return %c0_i32, %c0_i32_0 : i32, i32
  }
  func.func @transform_4(%arg0: i32, %arg1: i32) -> (i32, i32) {
    %c0_i32 = arith.constant 0 : i32
    %c0_i32_0 = arith.constant 0 : i32
    %c0_i32_1 = arith.constant 0 : i32
    return %c0_i32, %c0_i32_0 : i32, i32
  }
  func.func @transform_5(%arg0: i32, %arg1: i32) -> (i32, i32, i32, i32) {
    %c0_i32 = arith.constant 0 : i32
    %c0_i32_0 = arith.constant 0 : i32
    %c0_i32_1 = arith.constant 0 : i32
    return %arg0, %c0_i32, %arg1, %c0_i32_0 : i32, i32, i32, i32
  }
}

</mosaic_0001>

<llo_original>
// kernel: tpu_custom_call.1
$region0: #{tpu_custom_call.1}
  #allocation0 [shape = 'u32[]', space=smem, size = 0x4, offset = 0x4, fixed_abs, tag = 'smem constant byte address 0x4 - core index']
  #allocation1 [shape = 'u32[72,128]{1,0:T(1,128)}', space=vmem, size = 0x9000, scoped, tag = 'internal scratch']
  %s0 = inlined_call_operand.hbm [shape: f32[2,16,128], index: 0, kind: input, shape index: {}]
  %s1 = inlined_call_operand.hbm [shape: f32[2,1,2,128], index: 1, kind: input, shape index: {}]
  %s2 = inlined_call_operand.hbm [shape: f32[256,128], index: 2, kind: input, shape index: {}]
  %s3 = inlined_call_operand.hbm [shape: f32[256,128], index: 3, kind: input, shape index: {}]
  %s4 = inlined_call_operand.vmem [shape: f32[1,128], index: 4, kind: input, shape index: {}]
  %s5 = inlined_call_operand.hbm [shape: f32[2,2,16,128], index: 5, kind: output, shape index: {}]
  %s6 = sld [smem:[#allocation0]]
  $region69: #{tpu_custom_call.1} parent=0
    _
  %s8 = ssub.s32 1, %s6
  %s9 = scalar_select 0, %s8, %s6
  $region1: #{tpu_custom_call.1} parent=0
    #allocation2 [shape = 'u8[16384]{0}', space=vmem, size = 0x4000, scoped, tag = 'input window, operand 0']
    #allocation3 [shape = 's32[2]{0}', space=sflag, size = 0x8, scoped, tag = 'scoped memory for tpu_custom_call.1']
    #allocation4 [shape = 's32[2]{0}', space=sflag, size = 0x8, scoped, tag = 'scoped memory for tpu_custom_call.1']
    #allocation5 [shape = 'u8[2048]{0}', space=vmem, size = 0x800, scoped, tag = 'input window, operand 1']
    #allocation6 [shape = 's32[2]{0}', space=sflag, size = 0x8, scoped, tag = 'scoped memory for tpu_custom_call.1']
    #allocation7 [shape = 'u8[131072]{0}', space=vmem, size = 0x20000, scoped, tag = 'input window, operand 2, single buffered']
    #allocation8 [shape = 'u8[131072]{0}', space=vmem, size = 0x20000, scoped, tag = 'input window, operand 3, single buffered']
    #allocation9 [shape = 's32[1]{0}', space=sflag, size = 0x4, scoped, tag = 'scoped memory for tpu_custom_call.1']
    #allocation10 [shape = 'u8[32768]{0}', space=vmem, size = 0x8000, scoped, tag = 'output window, operand 0']
    %10 = vsyncpa [#allocation3], 0
    %s11 = scalar_lea.sflag [#allocation3], 1
    %12 = vsyncpa %s11, 0
    %13 = vsyncpa [#allocation6], 0
    %s14 = scalar_lea.sflag [#allocation6], 1
    %15 = vsyncpa %s14, 0
    %16 = vsyncpa [#allocation9], 0
    %17 = vsyncpa [#allocation4], 0
    %s18 = scalar_lea.sflag [#allocation4], 1
    %19 = vsyncpa %s18, 0
    loop: start=0, step=1, limit=4
    $region2: #{tpu_custom_call.1} parent=1 // loop_pre_header
      _
    $region3: #{tpu_custom_call.1} parent=1 // loop_header
      %s21 = sphi 0, %s25
      %p22 = scmp.ge.s32.totalorder %s21, 4
      %s28 = sphi 0, %s40
      %s29 = sphi 0, %s36
      %s30 = sphi 0, %s28
      %s31 = sphi 0, %s29
      %s32 = sphi 0, %s30
      %s33 = sphi 0, %s31
      %s45 = sphi 0, %s47
      %s48 = sphi 0, %s45
      %s49 = sphi 0, %s48
      %s65 = sphi 0, %s49
      %s73 = sphi 0, %s75
      %s76 = sphi 0, %s73
      %s77 = sphi 0, %s76
      %s93 = sphi 0, %s77
      %s97 = sphi 0, %s97
      %s99 = sphi 0, %s97
      %s100 = sphi 0, %s99
      %s114 = sphi 0, %s100
      %s118 = sphi 0, %s118
      %s120 = sphi 0, %s118
      %s121 = sphi 0, %s120
      %s135 = sphi 0, %s121
      %s139 = sphi 0, %s139
      %s141 = sphi 0, %s139
      %s142 = sphi 0, %s141
      %s156 = sphi 0, %s142
      %s164 = sphi 0, %s166
      %s167 = sphi 0, %s164
      %s168 = sphi 0, %s167
      %s184 = sphi 0, %s168
    $region4: #{tpu_custom_call.1} parent=1 // loop_header_branch
      %24 = sbr.rel (%p22) target = $region8
    $region5: #{tpu_custom_call.1} parent=1 // loop_body
      %s26 = ssub.s32 %s21, 1
      %s27 = ssub.s32 %s21, 2
      %s34 = sadd.s32 1, %s29
      %p35 = scmp.ge.s32.totalorder %s34, 1
      %s36 = scalar_select %p35, 0, %s34
      %s37 = sadd.s32 1, %s28
      %s38 = scalar_select %p35, %s37, %s28
      %p39 = scmp.ge.s32.totalorder %s38, 2
      %s40 = scalar_select %p39, 0, %s38
      %s41 = ssub.s32 %s28, %s40
      %s42 = ssub.s32 %s29, %s36
      %s43 = sor.u32 %s41, %s42
      %p44 = scmp.eq.s32.totalorder %s43, 0
      %s46 = sadd.s32 %s45, 1
      %s47 = scalar_select %p44, %s45, %s46
      %p50 = pneg %p44
      %p51 = scmp.eq.s32.totalorder %s21, 1
      %p52 = por %p50, %p51
      %p53 = scmp.ne.s32.totalorder %s45, %s48
      %p54 = scmp.eq.s32.totalorder %s21, 0
      %p55 = por %p53, %p54
      %p56 = scmp.ne.s32.totalorder %s45, %s48
      %p57 = scmp.eq.s32.totalorder %s26, 1
      %p58 = por %p56, %p57
      %p59 = scmp.ne.s32.totalorder %s48, %s49
      %p60 = scmp.eq.s32.totalorder %s26, 0
      %p61 = por %p59, %p60
      %p62 = scmp.ne.s32.totalorder %s48, %s49
      %p63 = scmp.eq.s32.totalorder %s27, 1
      %p64 = por %p62, %p63
      %p66 = scmp.ne.s32.totalorder %s49, %s65
      %p67 = scmp.eq.s32.totalorder %s27, 0
      %p68 = por %p66, %p67
      %s69 = ssub.s32 %s28, %s40
      %s70 = ssub.s32 %s29, %s36
      %s71 = sor.u32 %s69, %s70
      %p72 = scmp.eq.s32.totalorder %s71, 0
      %s74 = sadd.s32 %s73, 1
      %s75 = scalar_select %p72, %s73, %s74
      %p78 = pneg %p72
      %p79 = scmp.eq.s32.totalorder %s21, 1
      %p80 = por %p78, %p79
      %p81 = scmp.ne.s32.totalorder %s73, %s76
      %p82 = scmp.eq.s32.totalorder %s21, 0
      %p83 = por %p81, %p82
      %p84 = scmp.ne.s32.totalorder %s73, %s76
      %p85 = scmp.eq.s32.totalorder %s26, 1
      %p86 = por %p84, %p85
      %p87 = scmp.ne.s32.totalorder %s76, %s77
      %p88 = scmp.eq.s32.totalorder %s26, 0
      %p89 = por %p87, %p88
      %p90 = scmp.ne.s32.totalorder %s76, %s77
      %p91 = scmp.eq.s32.totalorder %s27, 1
      %p92 = por %p90, %p91
      %p94 = scmp.ne.s32.totalorder %s77, %s93
      %p95 = scmp.eq.s32.totalorder %s27, 0
      %p96 = por %p94, %p95
      %s98 = sadd.s32 %s97, 1
      %p101 = scmp.eq.s32.totalorder %s21, 1
      %p102 = scmp.ne.s32.totalorder %s97, %s99
      %p103 = scmp.eq.s32.totalorder %s21, 0
      %p104 = por %p102, %p103
      %p105 = scmp.ne.s32.totalorder %s97, %s99
      %p106 = scmp.eq.s32.totalorder %s26, 1
      %p107 = por %p105, %p106
      %p108 = scmp.ne.s32.totalorder %s99, %s100
      %p109 = scmp.eq.s32.totalorder %s26, 0
      %p110 = por %p108, %p109
      %p111 = scmp.ne.s32.totalorder %s99, %s100
      %p112 = scmp.eq.s32.totalorder %s27, 1
      %p113 = por %p111, %p112
      %p115 = scmp.ne.s32.totalorder %s100, %s114
      %p116 = scmp.eq.s32.totalorder %s27, 0
      %p117 = por %p115, %p116
      %s119 = sadd.s32 %s118, 1
      %p122 = scmp.eq.s32.totalorder %s21, 1
      %p123 = scmp.ne.s32.totalorder %s118, %s120
      %p124 = scmp.eq.s32.totalorder %s21, 0
      %p125 = por %p123, %p124
      %p126 = scmp.ne.s32.totalorder %s118, %s120
      %p127 = scmp.eq.s32.totalorder %s26, 1
      %p128 = por %p126, %p127
      %p129 = scmp.ne.s32.totalorder %s120, %s121
      %p130 = scmp.eq.s32.totalorder %s26, 0
      %p131 = por %p129, %p130
      %p132 = scmp.ne.s32.totalorder %s120, %s121
      %p133 = scmp.eq.s32.totalorder %s27, 1
      %p134 = por %p132, %p133
      %p136 = scmp.ne.s32.totalorder %s121, %s135
      %p137 = scmp.eq.s32.totalorder %s27, 0
      %p138 = por %p136, %p137
      %s140 = sadd.s32 %s139, 1
      %p143 = scmp.eq.s32.totalorder %s21, 1
      %p144 = scmp.ne.s32.totalorder %s139, %s141
      %p145 = scmp.eq.s32.totalorder %s21, 0
      %p146 = por %p144, %p145
      %p147 = scmp.ne.s32.totalorder %s139, %s141
      %p148 = scmp.eq.s32.totalorder %s26, 1
      %p149 = por %p147, %p148
      %p150 = scmp.ne.s32.totalorder %s141, %s142
      %p151 = scmp.eq.s32.totalorder %s26, 0
      %p152 = por %p150, %p151
      %p153 = scmp.ne.s32.totalorder %s141, %s142
      %p154 = scmp.eq.s32.totalorder %s27, 1
      %p155 = por %p153, %p154
      %p157 = scmp.ne.s32.totalorder %s142, %s156
      %p158 = scmp.eq.s32.totalorder %s27, 0
      %p159 = por %p157, %p158
      %s160 = ssub.s32 %s28, %s40
      %s161 = ssub.s32 %s29, %s36
      %s162 = sor.u32 %s160, %s161
      %p163 = scmp.eq.s32.totalorder %s162, 0
      %s165 = sadd.s32 %s164, 1
      %s166 = scalar_select %p163, %s164, %s165
      %p169 = pneg %p163
      %p170 = scmp.eq.s32.totalorder %s21, 1
      %p171 = por %p169, %p170
      %p172 = scmp.ne.s32.totalorder %s164, %s167
      %p173 = scmp.eq.s32.totalorder %s21, 0
      %p174 = por %p172, %p173
      %p175 = scmp.ne.s32.totalorder %s164, %s167
      %p176 = scmp.eq.s32.totalorder %s26, 1
      %p177 = por %p175, %p176
      %p178 = scmp.ne.s32.totalorder %s167, %s168
      %p179 = scmp.eq.s32.totalorder %s26, 0
      %p180 = por %p178, %p179
      %p181 = scmp.ne.s32.totalorder %s167, %s168
      %p182 = scmp.eq.s32.totalorder %s27, 1
      %p183 = por %p181, %p182
      %p185 = scmp.ne.s32.totalorder %s168, %s184
      %p186 = scmp.eq.s32.totalorder %s27, 0
      %p187 = por %p185, %p186
      %p188 = scmp.le.s32.totalorder 1, %s21
      %p189 = scmp.lt.s32.totalorder %s21, 3
      %p190 = pnand %p188, %p189
      %p191 = pneg %p190
      // Predicated region
      $region9: #{tpu_custom_call.1} parent=5 // pred_check
        _
      $region10: #{tpu_custom_call.1} parent=5 // pred_check_branch
        %193 = sbr.rel (%p190) target = $region12
      $region11: #{tpu_custom_call.1} parent=5 // pred_region
        %s194 = ssub.s32 %s21, 1
        // Predicated region
        $region13: #{tpu_custom_call.1} parent=11 // pred_check
          %p195 = pneg %p110
        $region14: #{tpu_custom_call.1} parent=11 // pred_check_branch
          %197 = sbr.rel (%p195) target = $region16
        $region15: #{tpu_custom_call.1} parent=11 // pred_region
          %199 = vsyncadd [#allocation6], 0
          %s200 = sshll.u32 %s2, 4
          %s201 = int_to_ptr.hbm [resolvable:$true] %s200
          %s202 = sshll.u32 [#allocation7], 4
          %s203 = int_to_ptr.vmem [resolvable:$true] %s202
          %208 = dma.hbm_to_vmem [thread:$0]  %s201, 4096, %s203, [#allocation6], 128, 128, 8
        $region16: #{tpu_custom_call.1} parent=11 // pred_fallthru
          _
        // Predicated region
        $region17: #{tpu_custom_call.1} parent=11 // pred_check
          %p209 = pneg %p131
        $region18: #{tpu_custom_call.1} parent=11 // pred_check_branch
          %211 = sbr.rel (%p209) target = $region20
        $region19: #{tpu_custom_call.1} parent=11 // pred_region
          %213 = vsyncadd [#allocation9], 0
          %s214 = sshll.u32 %s3, 4
          %s215 = int_to_ptr.hbm [resolvable:$true] %s214
          %s216 = sshll.u32 [#allocation8], 4
          %s217 = int_to_ptr.vmem [resolvable:$true] %s216
          %222 = dma.hbm_to_vmem [thread:$0]  %s215, 4096, %s217, [#allocation9], 128, 128, 8
        $region20: #{tpu_custom_call.1} parent=11 // pred_fallthru
          _
        // Predicated region
        $region21: #{tpu_custom_call.1} parent=11 // pred_check
          %p223 = pneg %p152
        $region22: #{tpu_custom_call.1} parent=11 // pred_check_branch
          %225 = sbr.rel (%p223) target = $region24
        $region23: #{tpu_custom_call.1} parent=11 // pred_region
          _
        $region24: #{tpu_custom_call.1} parent=11 // pred_fallthru
          _
      $region12: #{tpu_custom_call.1} parent=5 // pred_fallthru
        _
      %p226 = scmp.lt.s32.totalorder %s21, 2
      // Predicated region
      $region25: #{tpu_custom_call.1} parent=5 // pred_check
        %p227 = pneg %p226
      $region26: #{tpu_custom_call.1} parent=5 // pred_check_branch
        %229 = sbr.rel (%p227) target = $region28
      $region27: #{tpu_custom_call.1} parent=5 // pred_region
        // Predicated region
        $region29: #{tpu_custom_call.1} parent=27 // pred_check
          %p230 = pneg %p55
        $region30: #{tpu_custom_call.1} parent=27 // pred_check_branch
          %232 = sbr.rel (%p230) target = $region32
        $region31: #{tpu_custom_call.1} parent=27 // pred_region
          %s233 = sand.u32 %s45, 1
          %s234 = scalar_lea.sflag [#allocation3], %s233
          %s235 = sand.u32 %s45, 1
          %s236 = smul.addr %s235, 16
          %s237 = scalar_lea.vmem [#allocation2], %s236
          %s238 = smul.u32 2, %s29
          %240 = vsyncadd %s234, 0
          %s241 = smul.addr %s28, 2
          %s242 = sadd.s32 %s238, %s241
          %s243 = smul.addr %s242, 8
          %s244 = scalar_lea.hbm %s0, %s243
          %s245 = sshll.u32 %s244, 4
          %s246 = int_to_ptr.hbm [resolvable:$true] %s245
          %s247 = sshll.u32 %s237, 4
          %s248 = int_to_ptr.vmem [resolvable:$true] %s247
          %253 = dma.hbm_to_vmem [thread:$0]  %s246, 256, %s248, %s234, 128, 128, 8
        $region32: #{tpu_custom_call.1} parent=27 // pred_fallthru
          _
        // Predicated region
        $region33: #{tpu_custom_call.1} parent=27 // pred_check
          %p254 = pneg %p83
        $region34: #{tpu_custom_call.1} parent=27 // pred_check_branch
          %256 = sbr.rel (%p254) target = $region36
        $region35: #{tpu_custom_call.1} parent=27 // pred_region
          %s257 = sand.u32 %s21, 1
          %s258 = scalar_lea.sflag [#allocation6], %s257
          %s259 = sand.u32 %s73, 1
          %s260 = smul.addr %s259, 2
          %s261 = scalar_lea.vmem [#allocation5], %s260
          %263 = vsyncadd %s258, 0
          %s264 = sadd.s32 %s29, %s28
          %s265 = smul.addr %s264, 2
          %s266 = scalar_lea.hbm %s1, %s265
          %s268 = sshll.u32 %s266, 4
          %s269 = int_to_ptr.hbm [resolvable:$true] %s268
          %s270 = sshll.u32 %s261, 4
          %s271 = int_to_ptr.vmem [resolvable:$true] %s270
          %273 = dma.hbm_to_vmem [thread:$0]  %s269, 32, %s271, %s258
        $region36: #{tpu_custom_call.1} parent=27 // pred_fallthru
          _
      $region28: #{tpu_custom_call.1} parent=5 // pred_fallthru
        _
      %p274 = scmp.le.s32.totalorder 1, %s21
      %p275 = scmp.lt.s32.totalorder %s21, 3
      %p276 = pnand %p274, %p275
      %p277 = pneg %p276
      // Predicated region
      $region37: #{tpu_custom_call.1} parent=5 // pred_check
        _
      $region38: #{tpu_custom_call.1} parent=5 // pred_check_branch
        %279 = sbr.rel (%p276) target = $region40
      $region39: #{tpu_custom_call.1} parent=5 // pred_region
        %s280 = ssub.s32 %s21, 1
        %s281 = sand.u32 %s48, 1
        %s282 = scalar_lea.sflag [#allocation3], %s281
        %s283 = sand.u32 %s48, 1
        %s284 = smul.addr %s283, 16
        %s285 = scalar_lea.vmem [#allocation2], %s284
        // Predicated region
        $region41: #{tpu_custom_call.1} parent=39 // pred_check
          %p286 = pneg %p61
        $region42: #{tpu_custom_call.1} parent=39 // pred_check_branch
          %288 = sbr.rel (%p286) target = $region44
        $region43: #{tpu_custom_call.1} parent=39 // pred_region
          %290 = dma.done %s282, 256
        $region44: #{tpu_custom_call.1} parent=39 // pred_fallthru
          _
        %s291 = sand.u32 %s26, 1
        %s292 = scalar_lea.sflag [#allocation6], %s291
        %s293 = sand.u32 %s76, 1
        %s294 = smul.addr %s293, 2
        %s295 = scalar_lea.vmem [#allocation5], %s294
        // Predicated region
        $region45: #{tpu_custom_call.1} parent=39 // pred_check
          %p296 = pneg %p89
        $region46: #{tpu_custom_call.1} parent=39 // pred_check_branch
          %298 = sbr.rel (%p296) target = $region48
        $region47: #{tpu_custom_call.1} parent=39 // pred_region
          %300 = dma.done %s292, 32
        $region48: #{tpu_custom_call.1} parent=39 // pred_fallthru
          _
        // Predicated region
        $region49: #{tpu_custom_call.1} parent=39 // pred_check
          %p301 = pneg %p110
        $region50: #{tpu_custom_call.1} parent=39 // pred_check_branch
          %303 = sbr.rel (%p301) target = $region52
        $region51: #{tpu_custom_call.1} parent=39 // pred_region
          %305 = dma.done [#allocation6], 4096
        $region52: #{tpu_custom_call.1} parent=39 // pred_fallthru
          _
        // Predicated region
        $region53: #{tpu_custom_call.1} parent=39 // pred_check
          %p306 = pneg %p131
        $region54: #{tpu_custom_call.1} parent=39 // pred_check_branch
          %308 = sbr.rel (%p306) target = $region56
        $region55: #{tpu_custom_call.1} parent=39 // pred_region
          %310 = dma.done [#allocation9], 4096
        $region56: #{tpu_custom_call.1} parent=39 // pred_fallthru
          _
        %s311 = sand.u32 %s48, 1
        %s312 = scalar_lea.sflag [#allocation3], %s311
        %s313 = sand.u32 %s48, 1
        %s314 = smul.addr %s313, 16
        %s315 = scalar_lea.vmem [#allocation2], %s314
        %p316 = pneg %p61
        %p317 = pneg %p58
        %s318 = sand.u32 %s26, 1
        %s319 = scalar_lea.sflag [#allocation6], %s318
        %s320 = sand.u32 %s76, 1
        %s321 = smul.addr %s320, 2
        %s322 = scalar_lea.vmem [#allocation5], %s321
        %p323 = pneg %p89
        %p324 = pneg %p86
        %p325 = pneg %p110
        %p326 = pneg %p107
        %p327 = pneg %p131
        %p328 = pneg %p128
        %p329 = pneg %p152
        %p330 = pneg %p149
        %p331 = pneg %p180
        %p332 = pneg %p177
        %s333 = sand.u32 %s167, 1
        %s334 = scalar_lea.sflag [#allocation4], %s333
        %s335 = sand.u32 %s167, 1
        %s336 = smul.addr %s335, 32
        %s337 = scalar_lea.vmem [#allocation10], %s336
        %s338 = smul.u32 2, %s31
        %s339 = smul.u32 2, %s31
        %v340 = vld [vmem:[%s285] sm:$0xff]
        %v341 = vld [vmem:[%s285 + $0x8] sm:$0xff]
        %v342 = vld [vmem:[%s295] sm:$0x3]
        %v343 = vlaneseq
        %v344 = vshrl.u32 %v343, 7
        %v345 = vadd.s32 %v344, 8
        %vm346 = vcmp.eq.s32.totalorder %v344, 0
        %vm347 = vcmp.eq.s32.totalorder %v345, 0
        %v348 = vrot.slane %v340, 7
        %v349 = vrot.slane %v341, 7
        %vm350 = vcmp.lt.s32.totalorder %v344, 1
        %v351 = vsel %vm350, %v348, %v349
        %v352 = vsel %vm350, %v349, %v348
        %v353 = vperm.slane %v342, 0
        %v354 = vsel %vm346, %v353, %v352
        %v355 = vsel %vm347, %v353, %v351
        %vm356 = vcmp.eq.s32.totalorder %v344, 15
        %vm357 = vcmp.eq.s32.totalorder %v345, 15
        %v358 = vrot.slane %v340, 1
        %v359 = vrot.slane %v341, 1
        %vm360 = vcmp.lt.s32.totalorder %v344, 7
        %v361 = vsel %vm360, %v358, %v359
        %v362 = vsel %vm360, %v359, %v358
        %v363 = vperm.slane %v342, 1
        %v364 = vsel %vm356, %v363, %v361
        %v365 = vsel %vm357, %v363, %v362
        %v366 = vld [vmem:[%s4] sm:$0x1]
        %v367 = vld [vmem:[#allocation7] sm:$0xff]
        %v368 = vld [vmem:[#allocation7 + $0x8] sm:$0xff]
        %v369 = vld [vmem:[#allocation7 + $0x10] sm:$0xff]
        %v370 = vld [vmem:[#allocation7 + $0x18] sm:$0xff]
        %v371 = vld [vmem:[#allocation7 + $0x20] sm:$0xff]
        %v372 = vld [vmem:[#allocation7 + $0x28] sm:$0xff]
        %v373 = vld [vmem:[#allocation7 + $0x30] sm:$0xff]
        %v374 = vld [vmem:[#allocation7 + $0x38] sm:$0xff]
        %v375 = vld [vmem:[#allocation7 + $0x40] sm:$0xff]
        %v376 = vld [vmem:[#allocation7 + $0x48] sm:$0xff]
        %v377 = vld [vmem:[#allocation7 + $0x50] sm:$0xff]
        %v378 = vld [vmem:[#allocation7 + $0x58] sm:$0xff]
        %v379 = vld [vmem:[#allocation7 + $0x60] sm:$0xff]
        %v380 = vld [vmem:[#allocation7 + $0x68] sm:$0xff]
        %v381 = vld [vmem:[#allocation7 + $0x70] sm:$0xff]
        %v382 = vld [vmem:[#allocation7 + $0x78] sm:$0xff]
        %v383 = vld [vmem:[#allocation7 + $0x80] sm:$0xff]
        %v384 = vld [vmem:[#allocation7 + $0x88] sm:$0xff]
        %v385 = vld [vmem:[#allocation7 + $0x90] sm:$0xff]
        %v386 = vld [vmem:[#allocation7 + $0x98] sm:$0xff]
        %v387 = vld [vmem:[#allocation7 + $0xa0] sm:$0xff]
        %v388 = vld [vmem:[#allocation7 + $0xa8] sm:$0xff]
        %v389 = vld [vmem:[#allocation7 + $0xb0] sm:$0xff]
        %v390 = vld [vmem:[#allocation7 + $0xb8] sm:$0xff]
        %v391 = vld [vmem:[#allocation7 + $0xc0] sm:$0xff]
        %v392 = vld [vmem:[#allocation7 + $0xc8] sm:$0xff]
        %v393 = vld [vmem:[#allocation7 + $0xd0] sm:$0xff]
        %v394 = vld [vmem:[#allocation7 + $0xd8] sm:$0xff]
        %v395 = vld [vmem:[#allocation7 + $0xe0] sm:$0xff]
        %v396 = vld [vmem:[#allocation7 + $0xe8] sm:$0xff]
        %v397 = vld [vmem:[#allocation7 + $0xf0] sm:$0xff]
        %v398 = vld [vmem:[#allocation7 + $0xf8] sm:$0xff]
        %v400 = vperm.slane %v366, 0
        %402 = vmatpush.msra.mxu0 %v382
        %403 = vmatpush.msra.mxu0 %v381
        %404 = vmatpush.msra.mxu0 %v380
        %405 = vmatpush.msra.mxu0 %v379
        %406 = vmatpush.msra.mxu0 %v378
        %407 = vmatpush.msra.mxu0 %v377
        %408 = vmatpush.msra.mxu0 %v376
        %409 = vmatpush.msra.mxu0 %v375
        %410 = vmatpush.msra.mxu0 %v374
        %411 = vmatpush.msra.mxu0 %v373
        %412 = vmatpush.msra.mxu0 %v372
        %413 = vmatpush.msra.mxu0 %v371
        %414 = vmatpush.msra.mxu0 %v370
        %415 = vmatpush.msra.mxu0 %v369
        %416 = vmatpush.msra.mxu0 %v368
        %417 = vmatpush.msra.mxu0 %v367
        %418 = vmatmul.f32.gmra.mxu0 %v340
        %v419 = vpop.f32.mrf.mxu0
        %v420 = vadd.f32 %v400, %v419
        %421 = vmatmul.f32.gmra.mxu0 %v341
        %v422 = vpop.f32.mrf.mxu0
        %v423 = vadd.f32 %v400, %v422
        %424 = vdwg.mxu0
        %425 = vmatpush.msra.mxu0 %v398
        %426 = vmatpush.msra.mxu0 %v397
        %427 = vmatpush.msra.mxu0 %v396
        %428 = vmatpush.msra.mxu0 %v395
        %429 = vmatpush.msra.mxu0 %v394
        %430 = vmatpush.msra.mxu0 %v393
        %431 = vmatpush.msra.mxu0 %v392
        %432 = vmatpush.msra.mxu0 %v391
        %433 = vmatpush.msra.mxu0 %v390
        %434 = vmatpush.msra.mxu0 %v389
        %435 = vmatpush.msra.mxu0 %v388
        %436 = vmatpush.msra.mxu0 %v387
        %437 = vmatpush.msra.mxu0 %v386
        %438 = vmatpush.msra.mxu0 %v385
        %439 = vmatpush.msra.mxu0 %v384
        %440 = vmatpush.msra.mxu0 %v383
        %441 = vmatmul.f32.gmra.mxu0 %v354
        %v442 = vpop.f32.mrf.mxu0
        %v443 = vadd.f32 %v420, %v442
        %444 = vmatmul.f32.gmra.mxu0 %v355
        %v445 = vpop.f32.mrf.mxu0
        %v446 = vadd.f32 %v423, %v445
        %447 = vdwg.mxu0
        %v448 = vld [vmem:[#allocation8] sm:$0xff]
        %v449 = vld [vmem:[#allocation8 + $0x8] sm:$0xff]
        %v450 = vld [vmem:[#allocation8 + $0x10] sm:$0xff]
        %v451 = vld [vmem:[#allocation8 + $0x18] sm:$0xff]
        %v452 = vld [vmem:[#allocation8 + $0x20] sm:$0xff]
        %v453 = vld [vmem:[#allocation8 + $0x28] sm:$0xff]
        %v454 = vld [vmem:[#allocation8 + $0x30] sm:$0xff]
        %v455 = vld [vmem:[#allocation8 + $0x38] sm:$0xff]
        %v456 = vld [vmem:[#allocation8 + $0x40] sm:$0xff]
        %v457 = vld [vmem:[#allocation8 + $0x48] sm:$0xff]
        %v458 = vld [vmem:[#allocation8 + $0x50] sm:$0xff]
        %v459 = vld [vmem:[#allocation8 + $0x58] sm:$0xff]
        %v460 = vld [vmem:[#allocation8 + $0x60] sm:$0xff]
        %v461 = vld [vmem:[#allocation8 + $0x68] sm:$0xff]
        %v462 = vld [vmem:[#allocation8 + $0x70] sm:$0xff]
        %v463 = vld [vmem:[#allocation8 + $0x78] sm:$0xff]
        %v464 = vld [vmem:[#allocation8 + $0x80] sm:$0xff]
        %v465 = vld [vmem:[#allocation8 + $0x88] sm:$0xff]
        %v466 = vld [vmem:[#allocation8 + $0x90] sm:$0xff]
        %v467 = vld [vmem:[#allocation8 + $0x98] sm:$0xff]
        %v468 = vld [vmem:[#allocation8 + $0xa0] sm:$0xff]
        %v469 = vld [vmem:[#allocation8 + $0xa8] sm:$0xff]
        %v470 = vld [vmem:[#allocation8 + $0xb0] sm:$0xff]
        %v471 = vld [vmem:[#allocation8 + $0xb8] sm:$0xff]
        %v472 = vld [vmem:[#allocation8 + $0xc0] sm:$0xff]
        %v473 = vld [vmem:[#allocation8 + $0xc8] sm:$0xff]
        %v474 = vld [vmem:[#allocation8 + $0xd0] sm:$0xff]
        %v475 = vld [vmem:[#allocation8 + $0xd8] sm:$0xff]
        %v476 = vld [vmem:[#allocation8 + $0xe0] sm:$0xff]
        %v477 = vld [vmem:[#allocation8 + $0xe8] sm:$0xff]
        %v478 = vld [vmem:[#allocation8 + $0xf0] sm:$0xff]
        %v479 = vld [vmem:[#allocation8 + $0xf8] sm:$0xff]
        %480 = vmatpush.msra.mxu0 %v463
        %481 = vmatpush.msra.mxu0 %v462
        %482 = vmatpush.msra.mxu0 %v461
        %483 = vmatpush.msra.mxu0 %v460
        %484 = vmatpush.msra.mxu0 %v459
        %485 = vmatpush.msra.mxu0 %v458
        %486 = vmatpush.msra.mxu0 %v457
        %487 = vmatpush.msra.mxu0 %v456
        %488 = vmatpush.msra.mxu0 %v455
        %489 = vmatpush.msra.mxu0 %v454
        %490 = vmatpush.msra.mxu0 %v453
        %491 = vmatpush.msra.mxu0 %v452
        %492 = vmatpush.msra.mxu0 %v451
        %493 = vmatpush.msra.mxu0 %v450
        %494 = vmatpush.msra.mxu0 %v449
        %495 = vmatpush.msra.mxu0 %v448
        %496 = vmatmul.f32.gmra.mxu0 %v340
        %v497 = vpop.f32.mrf.mxu0
        %v498 = vadd.f32 %v400, %v497
        %499 = vmatmul.f32.gmra.mxu0 %v341
        %v500 = vpop.f32.mrf.mxu0
        %v501 = vadd.f32 %v400, %v500
        %502 = vdwg.mxu0
        %503 = vmatpush.msra.mxu0 %v479
        %504 = vmatpush.msra.mxu0 %v478
        %505 = vmatpush.msra.mxu0 %v477
        %506 = vmatpush.msra.mxu0 %v476
        %507 = vmatpush.msra.mxu0 %v475
        %508 = vmatpush.msra.mxu0 %v474
        %509 = vmatpush.msra.mxu0 %v473
        %510 = vmatpush.msra.mxu0 %v472
        %511 = vmatpush.msra.mxu0 %v471
        %512 = vmatpush.msra.mxu0 %v470
        %513 = vmatpush.msra.mxu0 %v469
        %514 = vmatpush.msra.mxu0 %v468
        %515 = vmatpush.msra.mxu0 %v467
        %516 = vmatpush.msra.mxu0 %v466
        %517 = vmatpush.msra.mxu0 %v465
        %518 = vmatpush.msra.mxu0 %v464
        %519 = vmatmul.f32.gmra.mxu0 %v364
        %v520 = vpop.f32.mrf.mxu0
        %v521 = vadd.f32 %v498, %v520
        %522 = vmatmul.f32.gmra.mxu0 %v365
        %v523 = vpop.f32.mrf.mxu0
        %v524 = vadd.f32 %v501, %v523
        %525 = vdwg.mxu0
        %526 = vst [vmem:[%s337] sm:$0xff] %v443
        %527 = vst [vmem:[%s337 + $0x8] sm:$0xff] %v446
        %s528 = scalar_lea.vmem %s337, 16 [#allocation10]
        %529 = vst [vmem:[%s528] sm:$0xff] %v521
        %530 = vst [vmem:[%s528 + $0x8] sm:$0xff] %v524
        %s531 = sand.u32 %s167, 1
        %s532 = scalar_lea.sflag [#allocation4], %s531
        %s533 = sand.u32 %s167, 1
        %s534 = smul.addr %s533, 32
        %s535 = scalar_lea.vmem [#allocation10], %s534
        // Predicated region
        $region57: #{tpu_custom_call.1} parent=39 // pred_check
          %p536 = pneg %p177
        $region58: #{tpu_custom_call.1} parent=39 // pred_check_branch
          %538 = sbr.rel (%p536) target = $region60
        $region59: #{tpu_custom_call.1} parent=39 // pred_region
          %s539 = smul.u32 2, %s31
          %541 = vsyncadd %s532, 0
          %s542 = smul.addr %s30, 4
          %s543 = sadd.s32 %s539, %s542
          %s544 = smul.addr %s543, 8
          %s545 = scalar_lea.hbm %s5, %s544
          %s546 = sshll.u32 %s535, 4
          %s547 = int_to_ptr.vmem [resolvable:$true] %s546
          %s548 = sshll.u32 %s545, 4
          %s549 = int_to_ptr.hbm [resolvable:$true] %s548
          %554 = dma.vmem_to_hbm [thread:$0]  %s547, 512, %s549, %s532, 128, 128, 8
        $region60: #{tpu_custom_call.1} parent=39 // pred_fallthru
          _
      $region40: #{tpu_custom_call.1} parent=5 // pred_fallthru
        _
      %p555 = scmp.le.s32.totalorder 2, %s21
      // Predicated region
      $region61: #{tpu_custom_call.1} parent=5 // pred_check
        %p556 = pneg %p555
      $region62: #{tpu_custom_call.1} parent=5 // pred_check_branch
        %558 = sbr.rel (%p556) target = $region64
      $region63: #{tpu_custom_call.1} parent=5 // pred_region
        %s559 = ssub.s32 %s21, 2
        // Predicated region
        $region65: #{tpu_custom_call.1} parent=63 // pred_check
          %p560 = pneg %p183
        $region66: #{tpu_custom_call.1} parent=63 // pred_check_branch
          %562 = sbr.rel (%p560) target = $region68
        $region67: #{tpu_custom_call.1} parent=63 // pred_region
          %s563 = sand.u32 %s168, 1
          %s564 = scalar_lea.sflag [#allocation4], %s563
          %s565 = sand.u32 %s168, 1
          %s566 = smul.addr %s565, 32
          %s567 = scalar_lea.vmem [#allocation10], %s566
          %569 = dma.done %s564, 512
        $region68: #{tpu_custom_call.1} parent=63 // pred_fallthru
          _
      $region64: #{tpu_custom_call.1} parent=5 // pred_fallthru
        _
    $region6: #{tpu_custom_call.1} parent=1 // loop_footer
      %s25 = sadd.s32 1, %s21
    $region7: #{tpu_custom_call.1} parent=1 // loop_footer_branch
      %20 = sbr.rel target = $region3
    $region8: #{tpu_custom_call.1} parent=1 // loop_exit
      _
    %570 = vsyncpa [#allocation3], 1
    %s571 = scalar_lea.sflag [#allocation3], 1
    %572 = vsyncpa %s571, 1
    %573 = vsyncpa [#allocation6], 1
    %s574 = scalar_lea.sflag [#allocation6], 1
    %575 = vsyncpa %s574, 1
    %576 = vsyncpa [#allocation9], 1
    %577 = vsyncpa [#allocation4], 1
    %s578 = scalar_lea.sflag [#allocation4], 1
    %579 = vsyncpa %s578, 1

</llo_original>
